<compile_context>
chip_gen: v7x
topology: tpu7x:2x2x1
jax: 0.10.0
libtpu: 0.0.40
codegen_flags: <defaults>
</compile_context>

<pallas_src>
import math
from functools import partial

import jax
import jax.numpy as jnp
from jax.experimental import pallas as pl
from jax.experimental.pallas import tpu as pltpu


# Preferred tile sizes.
_TM, _TN, _TK, _TH = 256, 512, 512, 512

# Fused-kernel VMEM budget (double-buffered blocks + accumulator).  Kept well
# under the default scoped-VMEM limits (16 MiB on v5e, 32 MiB on v6e/v7x).
_FUSED_VMEM_BUDGET = 14 * 1024 * 1024


def _choose_tile(dim, pref):
    """Largest tile <= pref that divides dim (halving from pref; falls back to dim)."""
    t = min(pref, dim)
    while dim % t != 0:
        t //= 2
    return max(t, 1)


def _gelu_tanh(y):
    """nn.GELU(approximate='tanh') in f32."""
    c = math.sqrt(2.0 / math.pi)
    return 0.5 * y * (1.0 + jnp.tanh(c * (y + 0.044715 * y * y * y)))


# -----------------------------------------------------------------------------
# Fused MLP kernel: grid = (M//tm, H//th); the 4*C intermediate never hits HBM.
# -----------------------------------------------------------------------------

def _mlp_fused_kernel(x_ref, wfc_ref, bfc_ref, wproj_ref, bproj_ref,
                      o_ref, acc_ref):
    kh = pl.program_id(1)

    @pl.when(kh == 0)
    def _():
        acc_ref[...] = jnp.zeros_like(acc_ref)

    # c_fc slab for this hidden block: (tm, th), f32 MXU accumulation.
    h = jnp.dot(x_ref[...].astype(jnp.bfloat16),
                wfc_ref[...].astype(jnp.bfloat16),
                preferred_element_type=jnp.float32)
    h = _gelu_tanh(h + bfc_ref[...])                      # bias + GELU in f32

    # Accumulate this hidden block's contribution to the (tm, C) output tile.
    acc_ref[...] += jnp.dot(h.astype(jnp.bfloat16),
                            wproj_ref[...].astype(jnp.bfloat16),
                            preferred_element_type=jnp.float32)

    @pl.when(kh == pl.num_programs(1) - 1)
    def _():
        o_ref[...] = (acc_ref[...] + bproj_ref[...]).astype(o_ref.dtype)


def _fused_vmem_bytes(tm, th, C, N, x_bytes, w_bytes, out_bytes):
    """Rough VMEM footprint (2x double-buffered blocks + f32 accumulator)."""
    per_step = (tm * C * x_bytes            # x tile
                + C * th * w_bytes          # W_fc block
                + th * 4                    # b_fc block
                + th * N * w_bytes          # W_proj block
                + N * 4                     # b_proj
                + tm * N * out_bytes)       # output tile
    return 2 * per_step + tm * N * 4        # + accumulator scratch


def mlp_fused_pallas(x2, fc_w, fc_b, proj_w, proj_b, tm, th,
                     out_dtype=jnp.float32):
    """y = gelu_tanh(x2 @ fc_w + fc_b) @ proj_w + proj_b, fully fused."""
    M, C = x2.shape
    _, H = fc_w.shape
    _, N = proj_w.shape
    grid = (M // tm, H // th)

    return pl.pallas_call(
        _mlp_fused_kernel,
        grid=grid,
        in_specs=[
            pl.BlockSpec((tm, C), lambda i, kh: (i, 0)),   # x: resident per i
            pl.BlockSpec((C, th), lambda i, kh: (0, kh)),  # W_fc column block
            pl.BlockSpec((1, th), lambda i, kh: (0, kh)),  # b_fc block
            pl.BlockSpec((th, N), lambda i, kh: (kh, 0)),  # W_proj row block
            pl.BlockSpec((1, N), lambda i, kh: (0, 0)),    # b_proj
        ],
        out_specs=pl.BlockSpec((tm, N), lambda i, kh: (i, 0)),
        out_shape=jax.ShapeDtypeStruct((M, N), out_dtype),
        scratch_shapes=[pltpu.VMEM((tm, N), jnp.float32)],
        compiler_params=pltpu.CompilerParams(
            dimension_semantics=("parallel", "arbitrary"),
            vmem_limit_bytes=40 * 1024 * 1024),
    )(x2, fc_w, fc_b.reshape(1, H).astype(jnp.float32),
      proj_w, proj_b.reshape(1, N).astype(jnp.float32))


# -----------------------------------------------------------------------------
# Fallback: two tiled linear kernels (c_fc + fused GELU, then c_proj).
# -----------------------------------------------------------------------------

def _linear_kernel(x_ref, w_ref, b_ref, o_ref, acc_ref, *, activation):
    k = pl.program_id(2)

    @pl.when(k == 0)
    def _():
        acc_ref[...] = jnp.zeros_like(acc_ref)

    acc_ref[...] += jnp.dot(x_ref[...].astype(jnp.bfloat16),
                            w_ref[...].astype(jnp.bfloat16),
                            preferred_element_type=jnp.float32)

    @pl.when(k == pl.num_programs(2) - 1)
    def _():
        y = acc_ref[...] + b_ref[...]
        if activation == "gelu_tanh":
            y = _gelu_tanh(y)
        o_ref[...] = y.astype(o_ref.dtype)


def linear_pallas(x, w, b, activation=None, out_dtype=jnp.float32):
    """y = act(x @ w + b).  x: [M, K], w: [K, N], b: [N] -> [M, N]."""
    M, K = x.shape
    K2, N = w.shape
    assert K == K2, (K, K2)

    tm = _choose_tile(M, _TM)
    tn = _choose_tile(N, _TN)
    tk = _choose_tile(K, _TK)
    grid = (M // tm, N // tn, K // tk)

    return pl.pallas_call(
        partial(_linear_kernel, activation=activation),
        grid=grid,
        in_specs=[
            pl.BlockSpec((tm, tk), lambda i, j, k: (i, k)),
            pl.BlockSpec((tk, tn), lambda i, j, k: (k, j)),
            pl.BlockSpec((1, tn), lambda i, j, k: (0, j)),
        ],
        out_specs=pl.BlockSpec((tm, tn), lambda i, j, k: (i, j)),
        out_shape=jax.ShapeDtypeStruct((M, N), out_dtype),
        scratch_shapes=[pltpu.VMEM((tm, tn), jnp.float32)],
        compiler_params=pltpu.CompilerParams(
            dimension_semantics=("parallel", "parallel", "arbitrary")),
    )(x, w, b.reshape(1, N).astype(jnp.float32))


# -----------------------------------------------------------------------------
# Public forward
# -----------------------------------------------------------------------------

def mlp_forward(params, x, fuse=True):
    """MLP.forward: c_proj(gelu_tanh(c_fc(x))).  x: [..., n_embd]."""
    orig_shape = x.shape
    C = orig_shape[-1]
    x2 = x.reshape(-1, C)
    M = x2.shape[0]
    H = params["fc_w"].shape[1]
    x_bytes = jnp.dtype(x2.dtype).itemsize
    w_bytes = jnp.dtype(params["fc_w"].dtype).itemsize

    use_fused = False
    tm = th = None
    if fuse:
        tm = _choose_tile(M, _TM)
        th = _choose_tile(H, _TH)
        # Back off the row tile until the fused kernel fits the VMEM budget.
        while (_fused_vmem_bytes(tm, th, C, C, x_bytes, w_bytes, 4)
               > _FUSED_VMEM_BUDGET and tm > 8):
            tm = _choose_tile(M, tm // 2)
        use_fused = (_fused_vmem_bytes(tm, th, C, C, x_bytes, w_bytes, 4)
                     <= _FUSED_VMEM_BUDGET)

    if use_fused:
        y = mlp_fused_pallas(x2, params["fc_w"], params["fc_b"],
                             params["proj_w"], params["proj_b"], tm, th,
                             out_dtype=jnp.float32)
    else:
        # Two-pass fallback: c_fc + GELU fused in the first kernel's epilogue;
        # the 4*C intermediate is stored in bf16 (halves its HBM traffic).
        h = linear_pallas(x2, params["fc_w"], params["fc_b"],
                          activation="gelu_tanh", out_dtype=jnp.bfloat16)
        y = linear_pallas(h, params["proj_w"], params["proj_b"],
                          activation=None, out_dtype=jnp.float32)
    return y.reshape(orig_shape)


# -----------------------------------------------------------------------------
# Deterministic parameter init (weights stored [in, out] so y = x @ w + b).
# -----------------------------------------------------------------------------

def init_params(key, n_embd, n_layer=2):
    k1, k2 = jax.random.split(key)
    std = 0.02
    # NANOGPT_SCALE_INIT: residual-projection std is multiplied by (2*n_layer)**-0.5.
    std_proj = 0.02 * (2 * n_layer) ** -0.5
    return {
        "fc_w": (std * jax.random.normal(k1, (n_embd, 4 * n_embd))).astype(jnp.float32),
        "fc_b": jnp.zeros((4 * n_embd,), jnp.float32),
        "proj_w": (std_proj * jax.random.normal(k2, (4 * n_embd, n_embd))).astype(jnp.float32),
        "proj_b": jnp.zeros((n_embd,), jnp.float32),
    }


def mlp_reference(params, x):
    """Pure-JAX f32 reference matching the PyTorch module."""
    C = x.shape[-1]
    h = x.reshape(-1, C) @ params["fc_w"] + params["fc_b"]
    h = _gelu_tanh(h)
    y = h @ params["proj_w"] + params["proj_b"]
    return y.reshape(x.shape)


# -----------------------------------------------------------------------------

if __name__ == "__main__":
    key = jax.random.PRNGKey(0)
    kp, kx, kp2, kx2 = jax.random.split(key, 4)

    fwd = jax.jit(mlp_forward)
    fwd_unfused = jax.jit(partial(mlp_forward, fuse=False))

    # Small config consistent with the module: batch=2, seq=8, n_embd=32.
    B, T, C = 2, 8, 32
    params = init_params(kp, C)
    x = jax.random.normal(kx, (B, T, C), dtype=jnp.float32)
    y = jax.block_until_ready(fwd(params, x))
    assert y.shape == (B, T, C)
    assert bool(jnp.all(jnp.isfinite(y)))
    y_ref = mlp_reference(params, x)
    assert bool(jnp.allclose(y, y_ref, atol=5e-2, rtol=5e-2)), \
        float(jnp.max(jnp.abs(y - y_ref)))

    # Moderately larger config exercising the multi-tile fused grid
    # (M=512 rows -> 2 row tiles; H=2048 hidden -> 4 accumulation steps).
    B2, T2, C2 = 2, 256, 512
    params2 = init_params(kp2, C2)
    x2 = jax.random.normal(kx2, (B2, T2, C2), dtype=jnp.float32)
    y2 = jax.block_until_ready(fwd(params2, x2))
    assert y2.shape == (B2, T2, C2)
    assert bool(jnp.all(jnp.isfinite(y2)))
    y2_ref = mlp_reference(params2, x2)
    assert bool(jnp.allclose(y2, y2_ref, atol=1e-1, rtol=1e-1)), \
        float(jnp.max(jnp.abs(y2 - y2_ref)))

    # Also exercise the two-pass fallback path (used for very large configs).
    y2_uf = jax.block_until_ready(fwd_unfused(params2, x2))
    assert bool(jnp.allclose(y2_uf, y2_ref, atol=1e-1, rtol=1e-1)), \
        float(jnp.max(jnp.abs(y2_uf - y2_ref)))

    print("KERNEL_OK")
</pallas_src>

<mosaic_0001>
module attributes {stable_mosaic.version = 11 : i64} {
  func.func @_mlp_fused_kernel(%arg0: i32, %arg1: i32, %arg2: memref<16x32xf32, #tpu.memory_space<vmem>>, %arg3: memref<32x128xf32, #tpu.memory_space<vmem>>, %arg4: memref<1x128xf32, #tpu.memory_space<vmem>>, %arg5: memref<128x32xf32, #tpu.memory_space<vmem>>, %arg6: memref<1x32xf32, #tpu.memory_space<vmem>>, %arg7: memref<16x32xf32, #tpu.memory_space<vmem>>, %arg8: memref<16x32xf32, #tpu.memory_space<vmem>>) attributes {dimension_semantics = [#tpu.dimension_semantics<parallel>, #tpu.dimension_semantics<arbitrary>], iteration_bounds = array<i64: 1, 1>, scalar_prefetch = 0 : i64, scratch_operands = 1 : i64, tpu.core_type = #tpu.core_type<tc>, window_params = [{transform_indices = @transform_0, window_bounds = array<i64: 16, 32>}, {transform_indices = @transform_1, window_bounds = array<i64: 32, 128>}, {transform_indices = @transform_2, window_bounds = array<i64: 1, 128>}, {transform_indices = @transform_3, window_bounds = array<i64: 128, 32>}, {pipeline_mode = #tpu.pipeline_mode<synchronous>, transform_indices = @transform_4, window_bounds = array<i64: 1, 32>}, {transform_indices = @transform_5, window_bounds = array<i64: 16, 32>}]} {
    %c0_i32 = arith.constant 0 : i32
    %0 = arith.cmpi eq, %arg1, %c0_i32 : i32
    %1 = arith.extui %0 : i1 to i32
    %c0_i32_0 = arith.constant 0 : i32
    %2 = arith.cmpi ne, %1, %c0_i32_0 : i32
    scf.if %2 {
      %cst_19 = arith.constant 0.000000e+00 : f32
      %34 = vector.broadcast %cst_19 : f32 to vector<16x32xf32>
      %c0_20 = arith.constant 0 : index
      %c0_21 = arith.constant 0 : index
      %35 = vector.load %arg8[%c0_20, %c0_21] : memref<16x32xf32, #tpu.memory_space<vmem>>, vector<16x32xf32>
      tpu.vector_store %arg8[%c0_20, %c0_21], %34 {strides = array<i32>} : memref<16x32xf32, #tpu.memory_space<vmem>>, vector<16x32xf32>,
    } else {
    }
    %c0 = arith.constant 0 : index
    %c0_1 = arith.constant 0 : index
    %3 = vector.load %arg2[%c0, %c0_1] : memref<16x32xf32, #tpu.memory_space<vmem>>, vector<16x32xf32>
    %4 = arith.truncf %3 : vector<16x32xf32> to vector<16x32xbf16>
    %c0_2 = arith.constant 0 : index
    %c0_3 = arith.constant 0 : index
    %5 = vector.load %arg3[%c0_2, %c0_3] : memref<32x128xf32, #tpu.memory_space<vmem>>, vector<32x128xf32>
    %6 = arith.truncf %5 : vector<32x128xf32> to vector<32x128xbf16>
    %cst = arith.constant dense<0.000000e+00> : vector<16x128xf32>
    %7 = tpu.matmul %4, %6, %cst {dimension_numbers = #tpu.dot_dimension_numbers<[1], [0], [0], [1], [0, 0, 1, 1], [], []>} : vector<16x32xbf16>, vector<32x128xbf16>, vector<16x128xf32> -> vector<16x128xf32>
    %c0_4 = arith.constant 0 : index
    %c0_5 = arith.constant 0 : index
    %8 = vector.load %arg4[%c0_4, %c0_5] : memref<1x128xf32, #tpu.memory_space<vmem>>, vector<1x128xf32>
    %9 = vector.broadcast %8 : vector<1x128xf32> to vector<16x128xf32>
    %10 = arith.addf %7, %9 : vector<16x128xf32>
    %cst_6 = arith.constant 5.000000e-01 : f32
    %11 = vector.broadcast %cst_6 : f32 to vector<16x128xf32>
    %12 = arith.mulf %11, %10 : vector<16x128xf32>
    %cst_7 = arith.constant 4.471500e-02 : f32
    %13 = vector.broadcast %cst_7 : f32 to vector<16x128xf32>
    %14 = arith.mulf %13, %10 : vector<16x128xf32>
    %15 = arith.mulf %14, %10 : vector<16x128xf32>
    %16 = arith.mulf %15, %10 : vector<16x128xf32>
    %17 = arith.addf %10, %16 : vector<16x128xf32>
    %cst_8 = arith.constant 0.797884583 : f32
    %18 = vector.broadcast %cst_8 : f32 to vector<16x128xf32>
    %19 = arith.mulf %18, %17 : vector<16x128xf32>
    %20 = math.tanh %19 : vector<16x128xf32>
    %cst_9 = arith.constant 1.000000e+00 : f32
    %21 = vector.broadcast %cst_9 : f32 to vector<16x128xf32>
    %22 = arith.addf %21, %20 : vector<16x128xf32>
    %23 = arith.mulf %12, %22 : vector<16x128xf32>
    %c0_10 = arith.constant 0 : index
    %c0_11 = arith.constant 0 : index
    %24 = vector.load %arg8[%c0_10, %c0_11] : memref<16x32xf32, #tpu.memory_space<vmem>>, vector<16x32xf32>
    %25 = arith.truncf %23 : vector<16x128xf32> to vector<16x128xbf16>
    %c0_12 = arith.constant 0 : index
    %c0_13 = arith.constant 0 : index
    %26 = vector.load %arg5[%c0_12, %c0_13] : memref<128x32xf32, #tpu.memory_space<vmem>>, vector<128x32xf32>
    %27 = arith.truncf %26 : vector<128x32xf32> to vector<128x32xbf16>
    %cst_14 = arith.constant dense<0.000000e+00> : vector<16x32xf32>
    %28 = tpu.matmul %25, %27, %cst_14 {dimension_numbers = #tpu.dot_dimension_numbers<[1], [0], [0], [1], [0, 0, 1, 1], [], []>} : vector<16x128xbf16>, vector<128x32xbf16>, vector<16x32xf32> -> vector<16x32xf32>
    %29 = arith.addf %24, %28 : vector<16x32xf32>
    %c0_15 = arith.constant 0 : index
    %c0_16 = arith.constant 0 : index
    %30 = vector.load %arg8[%c0_15, %c0_16] : memref<16x32xf32, #tpu.memory_space<vmem>>, vector<16x32xf32>
    tpu.vector_store %arg8[%c0_15, %c0_16], %29 {strides = array<i32>} : memref<16x32xf32, #tpu.memory_space<vmem>>, vector<16x32xf32>,
    %c0_i32_17 = arith.constant 0 : i32
    %31 = arith.cmpi eq, %arg1, %c0_i32_17 : i32
    %32 = arith.extui %31 : i1 to i32
    %c0_i32_18 = arith.constant 0 : i32
    %33 = arith.cmpi ne, %32, %c0_i32_18 : i32
    scf.if %33 {
      %c0_19 = arith.constant 0 : index
      %c0_20 = arith.constant 0 : index
      %34 = vector.load %arg8[%c0_19, %c0_20] : memref<16x32xf32, #tpu.memory_space<vmem>>, vector<16x32xf32>
      %c0_21 = arith.constant 0 : index
      %c0_22 = arith.constant 0 : index
      %35 = vector.load %arg6[%c0_21, %c0_22] : memref<1x32xf32, #tpu.memory_space<vmem>>, vector<1x32xf32>
      %36 = vector.broadcast %35 : vector<1x32xf32> to vector<16x32xf32>
      %37 = arith.addf %34, %36 : vector<16x32xf32>
      %c0_23 = arith.constant 0 : index
      %c0_24 = arith.constant 0 : index
      %38 = vector.load %arg7[%c0_23, %c0_24] : memref<16x32xf32, #tpu.memory_space<vmem>>, vector<16x32xf32>
      tpu.vector_store %arg7[%c0_23, %c0_24], %37 {strides = array<i32>} : memref<16x32xf32, #tpu.memory_space<vmem>>, vector<16x32xf32>,
    } else {
    }
    return
  }
  func.func @transform_0(%arg0: i32, %arg1: i32) -> (i32, i32) {
    %c0_i32 = arith.constant 0 : i32
    %c0_i32_0 = arith.constant 0 : i32
    return %arg0, %c0_i32 : i32, i32
  }
  func.func @transform_1(%arg0: i32, %arg1: i32) -> (i32, i32) {
    %c0_i32 = arith.constant 0 : i32
    %c0_i32_0 = arith.constant 0 : i32
    return %c0_i32, %arg1 : i32, i32
  }
  func.func @transform_2(%arg0: i32, %arg1: i32) -> (i32, i32) {
    %c0_i32 = arith.constant 0 : i32
    %c0_i32_0 = arith.constant 0 : i32
    return %c0_i32, %arg1 : i32, i32
  }
  func.func @transform_3(%arg0: i32, %arg1: i32) -> (i32, i32) {
    %c0_i32 = arith.constant 0 : i32
    %c0_i32_0 = arith.constant 0 : i32
    return %arg1, %c0_i32 : i32, i32
  }
  func.func @transform_4(%arg0: i32, %arg1: i32) -> (i32, i32) {
    %c0_i32 = arith.constant 0 : i32
    %c0_i32_0 = arith.constant 0 : i32
    %c0_i32_1 = arith.constant 0 : i32
    return %c0_i32, %c0_i32_0 : i32, i32
  }
  func.func @transform_5(%arg0: i32, %arg1: i32) -> (i32, i32) {
    %c0_i32 = arith.constant 0 : i32
    %c0_i32_0 = arith.constant 0 : i32
    return %arg0, %c0_i32 : i32, i32
  }
}

</mosaic_0001>

<llo_original>
// kernel: mlp_forward.1
$region0: #{mlp_forward.1}
  #allocation0 [shape = 'u32[]', space=smem, size = 0x4, offset = 0x4, fixed_abs, tag = 'smem constant byte address 0x4 - core index']
  #allocation1 [shape = 'u32[144,128]{1,0:T(1,128)}', space=vmem, size = 0x12000, scoped, tag = 'internal scratch']
  #allocation2 [shape = 'f32[16,32]{1,0:T(8,128)}', space=vmem, size = 0x2000, scoped, tag = 'scratch operand']
  %s0 = inlined_call_operand.vmem [shape: f32[16,32], index: 0, kind: input, shape index: {}]
  %s1 = inlined_call_operand.vmem [shape: f32[32,128], index: 1, kind: input, shape index: {}]
  %s2 = inlined_call_operand.vmem [shape: f32[1,128], index: 2, kind: input, shape index: {}]
  %s3 = inlined_call_operand.vmem [shape: f32[128,32], index: 3, kind: input, shape index: {}]
  %s4 = inlined_call_operand.vmem [shape: f32[1,32], index: 4, kind: input, shape index: {}]
  %s5 = inlined_call_operand.hbm [shape: f32[16,32], index: 5, kind: output, shape index: {}]
  %s6 = sld [smem:[#allocation0]]
  $region38: #{mlp_forward.1} parent=0
    _
  %s8 = ssub.s32 1, %s6
  %s9 = scalar_select 0, %s8, %s6
  $region1: #{mlp_forward.1} parent=0
    #allocation3 [shape = 'u8[8192]{0}', space=vmem, size = 0x2000, scoped, tag = 'output window, operand 0, single buffered']
    #allocation4 [shape = 's32[1]{0}', space=sflag, size = 0x4, scoped, tag = 'scoped memory for mlp_forward.1']
    %10 = vsyncpa [#allocation4], 0
    // Predicated region
    $region2: #{mlp_forward.1} parent=1 // pred_check
      _
    $region3: #{mlp_forward.1} parent=1 // pred_check_branch
      %12 = sbr.rel (0) target = $region5
    $region4: #{mlp_forward.1} parent=1 // pred_region
      _
    $region5: #{mlp_forward.1} parent=1 // pred_fallthru
      _
    // Predicated region
    $region6: #{mlp_forward.1} parent=1 // pred_check
      _
    $region7: #{mlp_forward.1} parent=1 // pred_check_branch
      %14 = sbr.rel (0) target = $region9
    $region8: #{mlp_forward.1} parent=1 // pred_region
      _
    $region9: #{mlp_forward.1} parent=1 // pred_fallthru
      _
    // Predicated region
    $region10: #{mlp_forward.1} parent=1 // pred_check
      _
    $region11: #{mlp_forward.1} parent=1 // pred_check_branch
      %16 = sbr.rel (0) target = $region13
    $region12: #{mlp_forward.1} parent=1 // pred_region
      _
    $region13: #{mlp_forward.1} parent=1 // pred_fallthru
      _
    // Predicated region
    $region14: #{mlp_forward.1} parent=1 // pred_check
      _
    $region15: #{mlp_forward.1} parent=1 // pred_check_branch
      %18 = sbr.rel (0) target = $region17
    $region16: #{mlp_forward.1} parent=1 // pred_region
      _
    $region17: #{mlp_forward.1} parent=1 // pred_fallthru
      _
    // Predicated region
    $region18: #{mlp_forward.1} parent=1 // pred_check
      _
    $region19: #{mlp_forward.1} parent=1 // pred_check_branch
      %20 = sbr.rel (0) target = $region21
    $region20: #{mlp_forward.1} parent=1 // pred_region
      _
    $region21: #{mlp_forward.1} parent=1 // pred_fallthru
      _
    %p22 = scmp.eq.s32.totalorder 0, 0
    // Predicated region
    $region22: #{mlp_forward.1} parent=1 // pred_check
      %p23 = pneg %p22
    $region23: #{mlp_forward.1} parent=1 // pred_check_branch
      %25 = sbr.rel (%p23) target = $region25
    $region24: #{mlp_forward.1} parent=1 // pred_region
      %vm26 = vcmask 261120
      %27 = vst.msk [vmem:[#allocation2] sm:$0xff] %vm26, 0.0
      %28 = vst.msk [vmem:[#allocation2 + $0x8] sm:$0xff] %vm26, 0.0
    $region25: #{mlp_forward.1} parent=1 // pred_fallthru
      _
    %v29 = vld [vmem:[%s0] sm:$0xff]
    %v30 = vld [vmem:[%s0 + $0x8] sm:$0xff]
    %v31 = vpack.c.bf16 %v30, %v29
    %v32 = vld [vmem:[%s1] sm:$0xff]
    %v33 = vld [vmem:[%s1 + $0x8] sm:$0xff]
    %v34 = vld [vmem:[%s1 + $0x10] sm:$0xff]
    %v35 = vld [vmem:[%s1 + $0x18] sm:$0xff]
    %v36 = vpack.c.bf16 %v33, %v32
    %v37 = vpack.c.bf16 %v35, %v34
    %v38 = vld [vmem:[%s2] sm:$0x1]
    %v40 = vlaneseq
    %v41 = vshrl.u32 %v40, 7
    %v42 = vsub.s32 0, %v41
    %v43 = vrot.slane %v38, %v42
    %vm45 = vcmask 261120
    %v47 = vsel %vm45, %v31, 0
    %49 = vmatprep.subr.bf16.mxu0 0
    %50 = vmatpush1.bf16.msra.mxu0 %v36
    %51 = vmatprep.subr.bf16.mxu0 0
    %52 = vmatpush1.bf16.msra.mxu0 %v37
    %53 = vmatprep.subr.bf16.mxu0 0
    %54 = vmatpush1.bf16.msra.mxu0 0
    %55 = vmatprep.subr.bf16.mxu0 0
    %56 = vmatpush1.bf16.msra.mxu0 0
    %57 = vmatprep.subr.bf16.mxu0 0
    %58 = vmatpush1.bf16.msra.mxu0 0
    %59 = vmatprep.subr.bf16.mxu0 0
    %60 = vmatpush1.bf16.msra.mxu0 0
    %61 = vmatprep.subr.bf16.mxu0 0
    %62 = vmatpush1.bf16.msra.mxu0 0
    %63 = vmatprep.subr.bf16.mxu0 0
    %64 = vmatpush1.bf16.msra.mxu0 0
    %65 = vmatprep.subr.bf16.mxu0 0
    %66 = vmatpush1.bf16.msra.mxu0 0
    %67 = vmatprep.subr.bf16.mxu0 0
    %68 = vmatpush1.bf16.msra.mxu0 0
    %69 = vmatprep.subr.bf16.mxu0 0
    %70 = vmatpush1.bf16.msra.mxu0 0
    %71 = vmatprep.subr.bf16.mxu0 0
    %72 = vmatpush1.bf16.msra.mxu0 0
    %73 = vmatprep.subr.bf16.mxu0 0
    %74 = vmatpush1.bf16.msra.mxu0 0
    %75 = vmatprep.subr.bf16.mxu0 0
    %76 = vmatpush1.bf16.msra.mxu0 0
    %77 = vmatprep.subr.bf16.mxu0 0
    %78 = vmatpush1.bf16.msra.mxu0 0
    %79 = vmatprep.subr.bf16.mxu0 0
    %80 = vmatpush1.bf16.msra.mxu0 0
    %81 = vmatprep.mubr.bf16.mxu0 0
    %82 = vmatmul.mubr.bf16.gmra.mrb[0].mxu0 %v47
    %v83 = vpop.f32.mrb[0].mxu0
    %v84 = vadd.f32 %v43, %v83
    %v85 = vpop.f32.mrb[0].mxu0
    %v86 = vpop.f32.mrb[0].mxu0
    %v87 = vadd.f32 %v43, %v86
    %v88 = vpop.f32.mrb[0].mxu0
    %89 = vdwg.mxu0
    %v90 = vmul.f32 %v84, 0.5
    %v91 = vmul.f32 %v87, 0.5
    %v92 = vmul.f32 %v84, 0.044715
    %v93 = vmul.f32 %v87, 0.044715
    %v94 = vmul.f32 %v92, %v84
    %v95 = vmul.f32 %v93, %v87
    %v96 = vmul.f32 %v94, %v84
    %v97 = vmul.f32 %v95, %v87
    %v98 = vadd.f32 %v84, %v96
    %v99 = vadd.f32 %v87, %v97
    %v100 = vmul.f32 %v98, 0.7978846
    %v101 = vmul.f32 %v99, 0.7978846
    %v102 = vtanh.pop %v100
    %v103 = vtanh.pop %v101
    %v104 = vadd.f32 %v102, 1.0
    %v105 = vadd.f32 %v103, 1.0
    %v106 = vmul.f32 %v90, %v104
    %v107 = vmul.f32 %v91, %v105
    %v108 = vld [vmem:[#allocation2] sm:$0xff]
    %v109 = vld [vmem:[#allocation2 + $0x8] sm:$0xff]
    %v110 = vpack.c.bf16 %v107, %v106
    %v111 = vld [vmem:[%s3] sm:$0xff]
    %v112 = vld [vmem:[%s3 + $0x8] sm:$0xff]
    %v113 = vld [vmem:[%s3 + $0x10] sm:$0xff]
    %v114 = vld [vmem:[%s3 + $0x18] sm:$0xff]
    %v115 = vld [vmem:[%s3 + $0x20] sm:$0xff]
    %v116 = vld [vmem:[%s3 + $0x28] sm:$0xff]
    %v117 = vld [vmem:[%s3 + $0x30] sm:$0xff]
    %v118 = vld [vmem:[%s3 + $0x38] sm:$0xff]
    %v119 = vld [vmem:[%s3 + $0x40] sm:$0xff]
    %v120 = vld [vmem:[%s3 + $0x48] sm:$0xff]
    %v121 = vld [vmem:[%s3 + $0x50] sm:$0xff]
    %v122 = vld [vmem:[%s3 + $0x58] sm:$0xff]
    %v123 = vld [vmem:[%s3 + $0x60] sm:$0xff]
    %v124 = vld [vmem:[%s3 + $0x68] sm:$0xff]
    %v125 = vld [vmem:[%s3 + $0x70] sm:$0xff]
    %v126 = vld [vmem:[%s3 + $0x78] sm:$0xff]
    %v127 = vpack.c.bf16 %v112, %v111
    %v128 = vpack.c.bf16 %v114, %v113
    %v129 = vpack.c.bf16 %v116, %v115
    %v130 = vpack.c.bf16 %v118, %v117
    %v131 = vpack.c.bf16 %v120, %v119
    %v132 = vpack.c.bf16 %v122, %v121
    %v133 = vpack.c.bf16 %v124, %v123
    %v134 = vpack.c.bf16 %v126, %v125
    %135 = vmatprep.subr.bf16.mxu0 0
    %136 = vmatpush1.bf16.msra.mxu0 %v127
    %137 = vmatprep.subr.bf16.mxu0 0
    %138 = vmatpush1.bf16.msra.mxu0 %v128
    %139 = vmatprep.subr.bf16.mxu0 0
    %140 = vmatpush1.bf16.msra.mxu0 %v129
    %141 = vmatprep.subr.bf16.mxu0 0
    %142 = vmatpush1.bf16.msra.mxu0 %v130
    %143 = vmatprep.subr.bf16.mxu0 0
    %144 = vmatpush1.bf16.msra.mxu0 %v131
    %145 = vmatprep.subr.bf16.mxu0 0
    %146 = vmatpush1.bf16.msra.mxu0 %v132
    %147 = vmatprep.subr.bf16.mxu0 0
    %148 = vmatpush1.bf16.msra.mxu0 %v133
    %149 = vmatprep.subr.bf16.mxu0 0
    %150 = vmatpush1.bf16.msra.mxu0 %v134
    %151 = vmatprep.subr.bf16.mxu0 0
    %152 = vmatpush1.bf16.msra.mxu0 0
    %153 = vmatprep.subr.bf16.mxu0 0
    %154 = vmatpush1.bf16.msra.mxu0 0
    %155 = vmatprep.subr.bf16.mxu0 0
    %156 = vmatpush1.bf16.msra.mxu0 0
    %157 = vmatprep.subr.bf16.mxu0 0
    %158 = vmatpush1.bf16.msra.mxu0 0
    %159 = vmatprep.subr.bf16.mxu0 0
    %160 = vmatpush1.bf16.msra.mxu0 0
    %161 = vmatprep.subr.bf16.mxu0 0
    %162 = vmatpush1.bf16.msra.mxu0 0
    %163 = vmatprep.subr.bf16.mxu0 0
    %164 = vmatpush1.bf16.msra.mxu0 0
    %165 = vmatprep.subr.bf16.mxu0 0
    %166 = vmatpush1.bf16.msra.mxu0 0
    %167 = vmatprep.mubr.bf16.mxu0 0
    %168 = vmatmul.mubr.bf16.gmra.mrb[0].mxu0 %v110
    %v169 = vpop.f32.mrb[0].mxu0
    %v170 = vadd.f32 0.0, %v169
    %v171 = vpop.f32.mrb[0].mxu0
    %v172 = vpop.f32.mrb[0].mxu0
    %v173 = vadd.f32 0.0, %v172
    %v174 = vpop.f32.mrb[0].mxu0
    %175 = vdwg.mxu0
    %v176 = vadd.f32 %v108, %v170
    %v177 = vadd.f32 %v109, %v173
    %178 = vst.msk [vmem:[#allocation2] sm:$0xff] %vm45, %v176
    %179 = vst.msk [vmem:[#allocation2 + $0x8] sm:$0xff] %vm45, %v177
    // Predicated region
    $region26: #{mlp_forward.1} parent=1 // pred_check
      %p180 = pneg %p22
    $region27: #{mlp_forward.1} parent=1 // pred_check_branch
      %182 = sbr.rel (%p180) target = $region29
    $region28: #{mlp_forward.1} parent=1 // pred_region
      %v183 = vld [vmem:[#allocation2] sm:$0xff]
      %v184 = vld [vmem:[#allocation2 + $0x8] sm:$0xff]
      %v185 = vld [vmem:[%s4] sm:$0x1]
      %v187 = vlaneseq
      %v188 = vshrl.u32 %v187, 7
      %v189 = vsub.s32 0, %v188
      %v190 = vrot.slane %v185, %v189
      %v192 = vadd.f32 %v183, %v190
      %v193 = vadd.f32 %v184, %v190
      %194 = vst.msk [vmem:[#allocation3] sm:$0xff] %vm45, %v192
      %195 = vst.msk [vmem:[#allocation3 + $0x8] sm:$0xff] %vm45, %v193
    $region29: #{mlp_forward.1} parent=1 // pred_fallthru
      _
    // Predicated region
    $region30: #{mlp_forward.1} parent=1 // pred_check
      _
    $region31: #{mlp_forward.1} parent=1 // pred_check_branch
      %197 = sbr.rel (0) target = $region33
    $region32: #{mlp_forward.1} parent=1 // pred_region
      %s199 = ssub.s32 256, 256
      %200 = vsyncadd [#allocation4], %s199
      %s201 = sshll.u32 [#allocation3], 4
      %s202 = int_to_ptr.vmem [resolvable:$true] %s201
      %207 = dma.vmem_to_hbm [thread:$0]  %s202, 256, %s5, [#allocation4], 128, 128, 8
    $region33: #{mlp_forward.1} parent=1 // pred_fallthru
      _
    // Predicated region
    $region34: #{mlp_forward.1} parent=1 // pred_check
      _
    $region35: #{mlp_forward.1} parent=1 // pred_check_branch
      %209 = sbr.rel (0) target = $region37
    $region36: #{mlp_forward.1} parent=1 // pred_region
      %210 = dma.done [#allocation4], 256
    $region37: #{mlp_forward.1} parent=1 // pred_fallthru
      _
    %211 = vsyncpa [#allocation4], 1

</llo_original>
